<compile_context>
chip_gen: v6e
topology: v6e:2x2x1
jax: 0.10.0
libtpu: 0.0.40
codegen_flags: <defaults>
</compile_context>

<pallas_src>
import jax
import jax.numpy as jnp
from jax.experimental import pallas as pl
from jax.experimental.pallas import tpu as pltpu


def _round_up(n: int, m: int) -> int:
    return ((n + m - 1) // m) * m


def soft_q_kernel(x_ref, a_ref, w1x_ref, w1a_ref, b1_ref, w2_ref, b2_ref,
                  w3_ref, b3_ref, o_ref):
    wdt = w1x_ref.dtype
    # fc1 (+ ReLU): split dot over (x | a) — no concatenated input needed.
    h1 = jnp.dot(x_ref[...].astype(wdt), w1x_ref[...], preferred_element_type=jnp.float32)
    h1 = h1 + jnp.dot(a_ref[...].astype(wdt), w1a_ref[...], preferred_element_type=jnp.float32)
    h1 = jnp.maximum(h1 + b1_ref[...], 0.0)                         # f32 VPU math
    # fc2 (+ ReLU)
    h2 = jnp.dot(h1.astype(w2_ref.dtype), w2_ref[...], preferred_element_type=jnp.float32)
    h2 = jnp.maximum(h2 + b2_ref[...], 0.0)
    # fc3 (out_features == 1): VPU multiply + lane reduction instead of a 1-column MXU matmul.
    q = jnp.sum(h2 * w3_ref[...], axis=-1, keepdims=True) + b3_ref[...]
    o_ref[...] = q.astype(o_ref.dtype)


def soft_q_forward_stacked(x, a, params, *, block_b: int = 256):
    """Fused forward for C stacked critics.

    x: (B, obs_dim); a: (B, act_dim)
    params: (w1x, w1a, b1, w2, b2, w3, b3), each with a leading critic axis C.
    Returns (C, B, 1) float32 Q-values.
    """
    w1x, w1a, b1, w2, b2, w3, b3 = params
    C, obs_dim, H = w1x.shape
    act_dim = w1a.shape[1]
    B = x.shape[0]

    # Cast activations to the weight storage dtype (halves x/a DMA when params are bf16).
    x = x.astype(w1x.dtype)
    a = a.astype(w1a.dtype)

    # Tile the batch; pad up to a whole number of sublane-aligned tiles.
    # block_b=256 matches the v6e/v7x MXU row width (use 128 if tuning for v5e);
    # tiles this size keep the double-buffered VMEM footprint far below v7x's 64 MiB.
    tb = min(block_b, _round_up(B, 8))
    bp = _round_up(B, tb)
    if bp != B:
        x = jnp.pad(x, ((0, bp - B), (0, 0)))
        a = jnp.pad(a, ((0, bp - B), (0, 0)))
    nb = bp // tb

    def resident(shape):
        # Weight/bias block: follows only the critic axis, so it stays VMEM-resident
        # (no re-DMA) across all batch tiles of a given critic.
        return pl.BlockSpec((None,) + shape, lambda c, i: (c,) + (0,) * len(shape))

    out = pl.pallas_call(
        soft_q_kernel,
        out_shape=jax.ShapeDtypeStruct((C, bp, 1), jnp.float32),
        grid=(C, nb),
        in_specs=[
            pl.BlockSpec((tb, obs_dim), lambda c, i: (i, 0)),
            pl.BlockSpec((tb, act_dim), lambda c, i: (i, 0)),
            resident((obs_dim, H)),
            resident((act_dim, H)),
            resident((1, H)),
            resident((H, H)),
            resident((1, H)),
            resident((1, H)),
            resident((1, 1)),
        ],
        out_specs=pl.BlockSpec((None, tb, 1), lambda c, i: (c, i, 0)),
        compiler_params=pltpu.CompilerParams(
            dimension_semantics=("parallel", "parallel")),
    )(x, a, w1x, w1a, b1, w2, b2, w3, b3)
    return out[:, :B, :]


def soft_q_forward(x, a, params, *, block_b: int = 256):
    """Single-critic forward matching SoftQNetwork.forward(x, a) -> (B, 1)."""
    stacked = tuple(p[None] for p in params)
    return soft_q_forward_stacked(x, a, stacked, block_b=block_b)[0]


def stack_params(params_list):
    """Stack per-critic param tuples along a new leading axis (fused SAC twin critics)."""
    return jax.tree_util.tree_map(lambda *xs: jnp.stack(xs, axis=0), *params_list)


def init_params(key, obs_dim, act_dim, hidden=256, dtype=jnp.float32):
    """PyTorch-style Linear init U(-1/sqrt(fan_in), 1/sqrt(fan_in)), returned in the
    kernel's layout: w1 split into (w1x, w1a); w3 stored as a (1, hidden) row; biases
    and the tiny fc3 params stay f32."""
    d_in = obs_dim + act_dim
    ks = jax.random.split(key, 6)

    def lin(kw, kb, fan_in, fan_out):
        bound = 1.0 / jnp.sqrt(jnp.float32(fan_in))
        w = jax.random.uniform(kw, (fan_in, fan_out), jnp.float32, -bound, bound)
        b = jax.random.uniform(kb, (1, fan_out), jnp.float32, -bound, bound)
        return w, b

    w1, b1 = lin(ks[0], ks[1], d_in, hidden)
    w2, b2 = lin(ks[2], ks[3], hidden, hidden)
    w3, b3 = lin(ks[4], ks[5], hidden, 1)
    return (w1[:obs_dim].astype(dtype), w1[obs_dim:].astype(dtype), b1,
            w2.astype(dtype), b2,
            jnp.transpose(w3).astype(jnp.float32), b3)


def reference_forward(x, a, params):
    """Pure-JAX f32 reference of the PyTorch module."""
    w1x, w1a, b1, w2, b2, w3, b3 = params
    h = jnp.concatenate([x, a], axis=1).astype(jnp.float32)
    w1 = jnp.concatenate([w1x, w1a], axis=0).astype(jnp.float32)
    h = jax.nn.relu(h @ w1 + b1)
    h = jax.nn.relu(h @ w2.astype(jnp.float32) + b2)
    return h @ jnp.transpose(w3) + b3


if __name__ == "__main__":
    key = jax.random.PRNGKey(0)
    k_x, k_a, k_p1, k_p2 = jax.random.split(key, 4)

    batch, obs_dim, act_dim = 8, 17, 6   # small MuJoCo-like env shapes
    x = jax.random.normal(k_x, (batch, obs_dim), jnp.float32)
    a = jax.random.uniform(k_a, (batch, act_dim), jnp.float32, -1.0, 1.0)

    # 1) single critic, f32 params (semantics of the PyTorch module)
    params = init_params(k_p1, obs_dim, act_dim, hidden=256)
    out = jax.block_until_ready(soft_q_forward(x, a, params))
    ref = reference_forward(x, a, params)
    assert out.shape == (batch, 1)
    assert jnp.allclose(out, ref, atol=1e-4, rtol=1e-4), "f32 mismatch vs JAX reference"

    # 2) fused SAC twin critics (qf1 / qf2) in a single pallas_call
    params2 = init_params(k_p2, obs_dim, act_dim, hidden=256)
    stacked = stack_params([params, params2])
    out_twin = jax.block_until_ready(soft_q_forward_stacked(x, a, stacked))
    ref_twin = jnp.stack([ref, reference_forward(x, a, params2)], axis=0)
    assert out_twin.shape == (2, batch, 1)
    assert jnp.allclose(out_twin, ref_twin, atol=1e-4, rtol=1e-4), "twin-critic mismatch"

    # 3) bf16 weight storage (v6e/v7x bandwidth path), f32 accumulation — looser tolerance
    params_bf16 = init_params(k_p1, obs_dim, act_dim, hidden=256, dtype=jnp.bfloat16)
    out_bf16 = jax.block_until_ready(soft_q_forward(x, a, params_bf16))
    assert out_bf16.shape == (batch, 1)
    assert jnp.allclose(out_bf16, ref, atol=1e-1, rtol=1e-1), "bf16 path diverged"

    print("KERNEL_OK")
</pallas_src>

<mosaic_0001>
module attributes {stable_mosaic.version = 11 : i64} {
  func.func @soft_q_kernel(%arg0: i32, %arg1: i32, %arg2: memref<8x17xf32, #tpu.memory_space<vmem>>, %arg3: memref<8x6xf32, #tpu.memory_space<vmem>>, %arg4: memref<1x17x256xf32, #tpu.memory_space<vmem>>, %arg5: memref<1x6x256xf32, #tpu.memory_space<vmem>>, %arg6: memref<1x1x256xf32, #tpu.memory_space<vmem>>, %arg7: memref<1x256x256xf32, #tpu.memory_space<vmem>>, %arg8: memref<1x1x256xf32, #tpu.memory_space<vmem>>, %arg9: memref<1x1x256xf32, #tpu.memory_space<vmem>>, %arg10: memref<1x1x1xf32, #tpu.memory_space<vmem>>, %arg11: memref<1x8x1xf32, #tpu.memory_space<vmem>>) attributes {dimension_semantics = [#tpu.dimension_semantics<parallel>, #tpu.dimension_semantics<parallel>], iteration_bounds = array<i64: 1, 1>, scalar_prefetch = 0 : i64, scratch_operands = 0 : i64, tpu.core_type = #tpu.core_type<tc>, window_params = [{transform_indices = @transform_0, window_bounds = array<i64: 8, 17>}, {transform_indices = @transform_1, window_bounds = array<i64: 8, 6>}, {transform_indices = @transform_2, window_bounds = array<i64: 1, 17, 256>}, {transform_indices = @transform_3, window_bounds = array<i64: 1, 6, 256>}, {transform_indices = @transform_4, window_bounds = array<i64: 1, 1, 256>}, {transform_indices = @transform_5, window_bounds = array<i64: 1, 256, 256>}, {transform_indices = @transform_6, window_bounds = array<i64: 1, 1, 256>}, {transform_indices = @transform_7, window_bounds = array<i64: 1, 1, 256>}, {transform_indices = @transform_8, window_bounds = array<i64: 1, 1, 1>}, {transform_indices = @transform_9, window_bounds = array<i64: 1, 8, 1>}]} {
    %c0 = arith.constant 0 : index
    %c0_0 = arith.constant 0 : index
    %0 = vector.load %arg2[%c0, %c0_0] : memref<8x17xf32, #tpu.memory_space<vmem>>, vector<8x17xf32>
    %c0_1 = arith.constant 0 : index
    %c0_2 = arith.constant 0 : index
    %c0_3 = arith.constant 0 : index
    %1 = vector.load %arg4[%c0_1, %c0_2, %c0_3] : memref<1x17x256xf32, #tpu.memory_space<vmem>>, vector<1x17x256xf32>
    %2 = vector.shape_cast %1 : vector<1x17x256xf32> to vector<17x256xf32>
    %cst = arith.constant dense<0.000000e+00> : vector<8x256xf32>
    %3 = tpu.matmul %0, %2, %cst {dimension_numbers = #tpu.dot_dimension_numbers<[1], [0], [0], [1], [0, 0, 1, 1], [], []>} : vector<8x17xf32>, vector<17x256xf32>, vector<8x256xf32> -> vector<8x256xf32>
    %c0_4 = arith.constant 0 : index
    %c0_5 = arith.constant 0 : index
    %4 = vector.load %arg3[%c0_4, %c0_5] : memref<8x6xf32, #tpu.memory_space<vmem>>, vector<8x6xf32>
    %c0_6 = arith.constant 0 : index
    %c0_7 = arith.constant 0 : index
    %c0_8 = arith.constant 0 : index
    %5 = vector.load %arg5[%c0_6, %c0_7, %c0_8] : memref<1x6x256xf32, #tpu.memory_space<vmem>>, vector<1x6x256xf32>
    %6 = vector.shape_cast %5 : vector<1x6x256xf32> to vector<6x256xf32>
    %cst_9 = arith.constant dense<0.000000e+00> : vector<8x256xf32>
    %7 = tpu.matmul %4, %6, %cst_9 {dimension_numbers = #tpu.dot_dimension_numbers<[1], [0], [0], [1], [0, 0, 1, 1], [], []>} : vector<8x6xf32>, vector<6x256xf32>, vector<8x256xf32> -> vector<8x256xf32>
    %8 = arith.addf %3, %7 : vector<8x256xf32>
    %c0_10 = arith.constant 0 : index
    %c0_11 = arith.constant 0 : index
    %c0_12 = arith.constant 0 : index
    %9 = vector.load %arg6[%c0_10, %c0_11, %c0_12] : memref<1x1x256xf32, #tpu.memory_space<vmem>>, vector<1x1x256xf32>
    %10 = vector.shape_cast %9 : vector<1x1x256xf32> to vector<1x256xf32>
    %11 = vector.broadcast %10 : vector<1x256xf32> to vector<8x256xf32>
    %12 = arith.addf %8, %11 : vector<8x256xf32>
    %cst_13 = arith.constant 0.000000e+00 : f32
    %13 = vector.broadcast %cst_13 : f32 to vector<8x256xf32>
    %14 = arith.maximumf %12, %13 : vector<8x256xf32>
    %c0_14 = arith.constant 0 : index
    %c0_15 = arith.constant 0 : index
    %c0_16 = arith.constant 0 : index
    %15 = vector.load %arg7[%c0_14, %c0_15, %c0_16] : memref<1x256x256xf32, #tpu.memory_space<vmem>>, vector<1x256x256xf32>
    %16 = vector.shape_cast %15 : vector<1x256x256xf32> to vector<256x256xf32>
    %cst_17 = arith.constant dense<0.000000e+00> : vector<8x256xf32>
    %17 = tpu.matmul %14, %16, %cst_17 {dimension_numbers = #tpu.dot_dimension_numbers<[1], [0], [0], [1], [0, 0, 1, 1], [], []>} : vector<8x256xf32>, vector<256x256xf32>, vector<8x256xf32> -> vector<8x256xf32>
    %c0_18 = arith.constant 0 : index
    %c0_19 = arith.constant 0 : index
    %c0_20 = arith.constant 0 : index
    %18 = vector.load %arg8[%c0_18, %c0_19, %c0_20] : memref<1x1x256xf32, #tpu.memory_space<vmem>>, vector<1x1x256xf32>
    %19 = vector.shape_cast %18 : vector<1x1x256xf32> to vector<1x256xf32>
    %20 = vector.broadcast %19 : vector<1x256xf32> to vector<8x256xf32>
    %21 = arith.addf %17, %20 : vector<8x256xf32>
    %cst_21 = arith.constant 0.000000e+00 : f32
    %22 = vector.broadcast %cst_21 : f32 to vector<8x256xf32>
    %23 = arith.maximumf %21, %22 : vector<8x256xf32>
    %c0_22 = arith.constant 0 : index
    %c0_23 = arith.constant 0 : index
    %c0_24 = arith.constant 0 : index
    %24 = vector.load %arg9[%c0_22, %c0_23, %c0_24] : memref<1x1x256xf32, #tpu.memory_space<vmem>>, vector<1x1x256xf32>
    %25 = vector.shape_cast %24 : vector<1x1x256xf32> to vector<1x256xf32>
    %26 = vector.broadcast %25 : vector<1x256xf32> to vector<8x256xf32>
    %27 = arith.mulf %23, %26 : vector<8x256xf32>
    %cst_25 = arith.constant dense<0.000000e+00> : vector<8xf32>
    %28 = vector.multi_reduction <add>, %27, %cst_25 [1] : vector<8x256xf32> to vector<8xf32>
    %29 = vector.shape_cast %28 : vector<8xf32> to vector<8x1xf32>
    %c0_26 = arith.constant 0 : index
    %c0_27 = arith.constant 0 : index
    %c0_28 = arith.constant 0 : index
    %30 = vector.load %arg10[%c0_26, %c0_27, %c0_28] : memref<1x1x1xf32, #tpu.memory_space<vmem>>, vector<1x1x1xf32>
    %31 = vector.shape_cast %30 : vector<1x1x1xf32> to vector<1x1xf32>
    %32 = vector.broadcast %31 : vector<1x1xf32> to vector<8x1xf32>
    %33 = arith.addf %29, %32 : vector<8x1xf32>
    %c0_29 = arith.constant 0 : index
    %c0_30 = arith.constant 0 : index
    %c0_31 = arith.constant 0 : index
    %34 = vector.load %arg11[%c0_29, %c0_30, %c0_31] : memref<1x8x1xf32, #tpu.memory_space<vmem>>, vector<1x8x1xf32>
    %35 = vector.shape_cast %34 : vector<1x8x1xf32> to vector<8x1xf32>
    %36 = vector.shape_cast %33 : vector<8x1xf32> to vector<1x8x1xf32>
    tpu.vector_store %arg11[%c0_29, %c0_30, %c0_31], %36 {strides = array<i32>} : memref<1x8x1xf32, #tpu.memory_space<vmem>>, vector<1x8x1xf32>,
    return
  }
  func.func @transform_0(%arg0: i32, %arg1: i32) -> (i32, i32) {
    %c0_i32 = arith.constant 0 : i32
    %c0_i32_0 = arith.constant 0 : i32
    return %arg1, %c0_i32 : i32, i32
  }
  func.func @transform_1(%arg0: i32, %arg1: i32) -> (i32, i32) {
    %c0_i32 = arith.constant 0 : i32
    %c0_i32_0 = arith.constant 0 : i32
    return %arg1, %c0_i32 : i32, i32
  }
  func.func @transform_2(%arg0: i32, %arg1: i32) -> (i32, i32, i32) {
    %c0_i32 = arith.constant 0 : i32
    %c0_i32_0 = arith.constant 0 : i32
    %c0_i32_1 = arith.constant 0 : i32
    return %arg0, %c0_i32, %c0_i32_0 : i32, i32, i32
  }
  func.func @transform_3(%arg0: i32, %arg1: i32) -> (i32, i32, i32) {
    %c0_i32 = arith.constant 0 : i32
    %c0_i32_0 = arith.constant 0 : i32
    %c0_i32_1 = arith.constant 0 : i32
    return %arg0, %c0_i32, %c0_i32_0 : i32, i32, i32
  }
  func.func @transform_4(%arg0: i32, %arg1: i32) -> (i32, i32, i32) {
    %c0_i32 = arith.constant 0 : i32
    %c0_i32_0 = arith.constant 0 : i32
    %c0_i32_1 = arith.constant 0 : i32
    return %arg0, %c0_i32, %c0_i32_0 : i32, i32, i32
  }
  func.func @transform_5(%arg0: i32, %arg1: i32) -> (i32, i32, i32) {
    %c0_i32 = arith.constant 0 : i32
    %c0_i32_0 = arith.constant 0 : i32
    %c0_i32_1 = arith.constant 0 : i32
    return %arg0, %c0_i32, %c0_i32_0 : i32, i32, i32
  }
  func.func @transform_6(%arg0: i32, %arg1: i32) -> (i32, i32, i32) {
    %c0_i32 = arith.constant 0 : i32
    %c0_i32_0 = arith.constant 0 : i32
    %c0_i32_1 = arith.constant 0 : i32
    return %arg0, %c0_i32, %c0_i32_0 : i32, i32, i32
  }
  func.func @transform_7(%arg0: i32, %arg1: i32) -> (i32, i32, i32) {
    %c0_i32 = arith.constant 0 : i32
    %c0_i32_0 = arith.constant 0 : i32
    %c0_i32_1 = arith.constant 0 : i32
    return %arg0, %c0_i32, %c0_i32_0 : i32, i32, i32
  }
  func.func @transform_8(%arg0: i32, %arg1: i32) -> (i32, i32, i32) {
    %c0_i32 = arith.constant 0 : i32
    %c0_i32_0 = arith.constant 0 : i32
    %c0_i32_1 = arith.constant 0 : i32
    return %arg0, %c0_i32, %c0_i32_0 : i32, i32, i32
  }
  func.func @transform_9(%arg0: i32, %arg1: i32) -> (i32, i32, i32) {
    %c0_i32 = arith.constant 0 : i32
    %c0_i32_0 = arith.constant 0 : i32
    return %arg0, %arg1, %c0_i32 : i32, i32, i32
  }
}

</mosaic_0001>

<llo_original>
// kernel: tpu_custom_call.1
$region0: #{tpu_custom_call.1}
  #allocation0 [shape = 'u32[]', space=smem, size = 0x4, offset = 0x4, fixed_abs, tag = 'smem constant byte address 0x4 - core index']
  #allocation1 [shape = 'u32[144,128]{1,0:T(1,128)}', space=vmem, size = 0x12000, scoped, tag = 'internal scratch']
  #allocation2 [shape = 'f32[1,1,1]{2,1,0:T(1,128)S(1)}', space=vmem, size = 0x200, scoped, tag = 'scoped memory for tpu_custom_call.1']
  %s0 = inlined_call_operand.vmem [shape: f32[8,17], index: 0, kind: input, shape index: {}]
  %s1 = inlined_call_operand.vmem [shape: f32[8,6], index: 1, kind: input, shape index: {}]
  %s2 = inlined_call_operand.vmem [shape: f32[1,17,256], index: 2, kind: input, shape index: {}]
  %s3 = inlined_call_operand.vmem [shape: f32[1,6,256], index: 3, kind: input, shape index: {}]
  %s4 = inlined_call_operand.vmem [shape: f32[1,1,256], index: 4, kind: input, shape index: {}]
  %s5 = inlined_call_operand.hbm [shape: f32[1,256,256], index: 5, kind: input, shape index: {}]
  %s6 = inlined_call_operand.vmem [shape: f32[1,1,256], index: 6, kind: input, shape index: {}]
  %s7 = inlined_call_operand.vmem [shape: f32[1,1,256], index: 7, kind: input, shape index: {}]
  %s8 = inlined_call_operand.<no memory space> [shape: f32[1,1,1], index: 8, kind: input, shape index: {}]
  %s9 = inlined_call_operand.vmem [shape: f32[1,8,1], index: 9, kind: output, shape index: {}]
  %s10 = sld [smem:[#allocation0]]
  $region50: #{tpu_custom_call.1} parent=0
    _
  %s12 = ssub.s32 1, %s10
  %s13 = scalar_select 0, %s12, %s10
  %v14 = vstv %s8
  %15 = vst [vmem:[#allocation2] sm:$0x1] %v14
  $region1: #{tpu_custom_call.1} parent=0
    #allocation3 [shape = 'u8[262144]{0}', space=vmem, size = 0x40000, scoped, tag = 'input window, operand 5, single buffered']
    #allocation4 [shape = 's32[1]{0}', space=sflag, size = 0x4, scoped, tag = 'scoped memory for tpu_custom_call.1']
    %16 = vsyncpa [#allocation4], 0
    // Predicated region
    $region2: #{tpu_custom_call.1} parent=1 // pred_check
      _
    $region3: #{tpu_custom_call.1} parent=1 // pred_check_branch
      %18 = sbr.rel (0) target = $region5
    $region4: #{tpu_custom_call.1} parent=1 // pred_region
      _
    $region5: #{tpu_custom_call.1} parent=1 // pred_fallthru
      _
    // Predicated region
    $region6: #{tpu_custom_call.1} parent=1 // pred_check
      _
    $region7: #{tpu_custom_call.1} parent=1 // pred_check_branch
      %20 = sbr.rel (0) target = $region9
    $region8: #{tpu_custom_call.1} parent=1 // pred_region
      _
    $region9: #{tpu_custom_call.1} parent=1 // pred_fallthru
      _
    // Predicated region
    $region10: #{tpu_custom_call.1} parent=1 // pred_check
      _
    $region11: #{tpu_custom_call.1} parent=1 // pred_check_branch
      %22 = sbr.rel (0) target = $region13
    $region12: #{tpu_custom_call.1} parent=1 // pred_region
      _
    $region13: #{tpu_custom_call.1} parent=1 // pred_fallthru
      _
    // Predicated region
    $region14: #{tpu_custom_call.1} parent=1 // pred_check
      _
    $region15: #{tpu_custom_call.1} parent=1 // pred_check_branch
      %24 = sbr.rel (0) target = $region17
    $region16: #{tpu_custom_call.1} parent=1 // pred_region
      _
    $region17: #{tpu_custom_call.1} parent=1 // pred_fallthru
      _
    // Predicated region
    $region18: #{tpu_custom_call.1} parent=1 // pred_check
      _
    $region19: #{tpu_custom_call.1} parent=1 // pred_check_branch
      %26 = sbr.rel (0) target = $region21
    $region20: #{tpu_custom_call.1} parent=1 // pred_region
      _
    $region21: #{tpu_custom_call.1} parent=1 // pred_fallthru
      _
    // Predicated region
    $region22: #{tpu_custom_call.1} parent=1 // pred_check
      _
    $region23: #{tpu_custom_call.1} parent=1 // pred_check_branch
      %28 = sbr.rel (0) target = $region25
    $region24: #{tpu_custom_call.1} parent=1 // pred_region
      %s30 = ssub.s32 8192, 8192
      %31 = vsyncadd [#allocation4], %s30
      %s32 = sshll.u32 [#allocation3], 4
      %s33 = int_to_ptr.vmem [resolvable:$true] %s32
      %38 = dma.hbm_to_vmem [thread:$0]  %s5, 8192, %s33, [#allocation4], 256, 256, 16
    $region25: #{tpu_custom_call.1} parent=1 // pred_fallthru
      _
    // Predicated region
    $region26: #{tpu_custom_call.1} parent=1 // pred_check
      _
    $region27: #{tpu_custom_call.1} parent=1 // pred_check_branch
      %40 = sbr.rel (0) target = $region29
    $region28: #{tpu_custom_call.1} parent=1 // pred_region
      _
    $region29: #{tpu_custom_call.1} parent=1 // pred_fallthru
      _
    // Predicated region
    $region30: #{tpu_custom_call.1} parent=1 // pred_check
      _
    $region31: #{tpu_custom_call.1} parent=1 // pred_check_branch
      %42 = sbr.rel (0) target = $region33
    $region32: #{tpu_custom_call.1} parent=1 // pred_region
      _
    $region33: #{tpu_custom_call.1} parent=1 // pred_fallthru
      _
    // Predicated region
    $region34: #{tpu_custom_call.1} parent=1 // pred_check
      _
    $region35: #{tpu_custom_call.1} parent=1 // pred_check_branch
      %44 = sbr.rel (0) target = $region37
    $region36: #{tpu_custom_call.1} parent=1 // pred_region
      _
    $region37: #{tpu_custom_call.1} parent=1 // pred_fallthru
      _
    // Predicated region
    $region38: #{tpu_custom_call.1} parent=1 // pred_check
      _
    $region39: #{tpu_custom_call.1} parent=1 // pred_check_branch
      %46 = sbr.rel (0) target = $region41
    $region40: #{tpu_custom_call.1} parent=1 // pred_region
      %47 = dma.done [#allocation4], 8192
    $region41: #{tpu_custom_call.1} parent=1 // pred_fallthru
      _
    %v48 = vld [vmem:[%s0] sm:$0xff]
    %v49 = vld [vmem:[%s2] sm:$0xff]
    %v50 = vld [vmem:[%s2 + $0x8] sm:$0xff]
    %v51 = vld [vmem:[%s2 + $0x10] sm:$0xff]
    %v52 = vld [vmem:[%s2 + $0x18] sm:$0xff]
    %v53 = vld [vmem:[%s2 + $0x20] sm:$0x1]
    %v54 = vld [vmem:[%s2 + $0x28] sm:$0x1]
    %v55 = vld [vmem:[%s1] sm:$0xff]
    %v56 = vld [vmem:[%s3] sm:$0x3f]
    %v57 = vld [vmem:[%s3 + $0x8] sm:$0x3f]
    %vm58 = vcmask 48128
    %v60 = vsel %vm58, %v55, 0
    %vm62 = vcmask 1045504
    %v64 = vsel %vm62, %v56, 0
    %v67 = vsel %vm62, %v57, 0
    %69 = vmatprep.subr.mxu0 0.0
    %70 = vmatpush1.msra.mxu0 0.0
    %71 = vmatprep.subr.mxu0 0.0
    %72 = vmatpush1.msra.mxu0 0.0
    %73 = vmatprep.subr.mxu0 0.0
    %74 = vmatpush1.msra.mxu0 0.0
    %75 = vmatprep.subr.mxu0 0.0
    %76 = vmatpush1.msra.mxu0 0.0
    %77 = vmatprep.subr.mxu0 0.0
    %78 = vmatpush1.msra.mxu0 0.0
    %79 = vmatprep.subr.mxu0 0.0
    %80 = vmatpush1.msra.mxu0 0.0
    %81 = vmatprep.subr.mxu0 0.0
    %82 = vmatpush1.msra.mxu0 0.0
    %83 = vmatprep.subr.mxu0 0.0
    %84 = vmatpush1.msra.mxu0 0.0
    %85 = vmatprep.subr.mxu0 0.0
    %86 = vmatpush1.msra.mxu0 0.0
    %87 = vmatprep.subr.mxu0 0.0
    %88 = vmatpush1.msra.mxu0 0.0
    %89 = vmatprep.subr.mxu0 0.0
    %90 = vmatpush1.msra.mxu0 0.0
    %91 = vmatprep.subr.mxu0 0.0
    %92 = vmatpush1.msra.mxu0 0.0
    %93 = vmatprep.subr.mxu0 0.0
    %94 = vmatpush1.msra.mxu0 0.0
    %95 = vmatprep.subr.mxu0 0.0
    %96 = vmatpush1.msra.mxu0 0.0
    %97 = vmatprep.subr.mxu0 0.0
    %98 = vmatpush1.msra.mxu0 0.0
    %99 = vmatprep.subr.mxu0 %v67
    %100 = vmatpush1.msra.mxu0 %v64
    %101 = vmatprep.subr.mxu0 0.0
    %102 = vmatpush2.msra.mxu0 0.0
    %103 = vmatprep.subr.mxu0 0.0
    %104 = vmatpush2.msra.mxu0 0.0
    %105 = vmatprep.subr.mxu0 0.0
    %106 = vmatpush2.msra.mxu0 0.0
    %107 = vmatprep.subr.mxu0 0.0
    %108 = vmatpush2.msra.mxu0 0.0
    %109 = vmatprep.subr.mxu0 0.0
    %110 = vmatpush2.msra.mxu0 0.0
    %111 = vmatprep.subr.mxu0 0.0
    %112 = vmatpush2.msra.mxu0 0.0
    %113 = vmatprep.subr.mxu0 0.0
    %114 = vmatpush2.msra.mxu0 0.0
    %115 = vmatprep.subr.mxu0 0.0
    %116 = vmatpush2.msra.mxu0 0.0
    %117 = vmatprep.subr.mxu0 0.0
    %118 = vmatpush2.msra.mxu0 0.0
    %119 = vmatprep.subr.mxu0 0.0
    %120 = vmatpush2.msra.mxu0 0.0
    %121 = vmatprep.subr.mxu0 0.0
    %122 = vmatpush2.msra.mxu0 0.0
    %123 = vmatprep.subr.mxu0 0.0
    %124 = vmatpush2.msra.mxu0 0.0
    %125 = vmatprep.subr.mxu0 0.0
    %126 = vmatpush2.msra.mxu0 0.0
    %127 = vmatprep.subr.mxu0 0.0
    %128 = vmatpush2.msra.mxu0 0.0
    %129 = vmatprep.subr.mxu0 0.0
    %130 = vmatpush2.msra.mxu0 0.0
    %131 = vmatprep.subr.mxu0 0.0
    %132 = vmatpush2.msra.mxu0 0.0
    %133 = vmatprep.mubr.f32.mxu0 0.0
    %134 = vmatmul.mubr.f32.gmra.mxu0 %v60
    %v135 = vpop.f32.mrf.mxu0
    %v136 = vadd.f32 0.0, %v135
    %v137 = vpop.f32.mrf.mxu0
    %v138 = vadd.f32 0.0, %v137
    %139 = vdwg.mxu0
    %vm140 = vcmask 138240
    %v142 = vsel %vm140, %v48, 0
    %vm144 = vcmask 1040384
    %v146 = vsel %vm144, %v53, 0
    %v149 = vsel %vm144, %v54, 0
    %151 = vmatprep.subr.mxu0 0.0
    %152 = vmatpush1.msra.mxu0 0.0
    %153 = vmatprep.subr.mxu0 0.0
    %154 = vmatpush1.msra.mxu0 0.0
    %155 = vmatprep.subr.mxu0 0.0
    %156 = vmatpush1.msra.mxu0 0.0
    %157 = vmatprep.subr.mxu0 0.0
    %158 = vmatpush1.msra.mxu0 0.0
    %159 = vmatprep.subr.mxu0 0.0
    %160 = vmatpush1.msra.mxu0 0.0
    %161 = vmatprep.subr.mxu0 0.0
    %162 = vmatpush1.msra.mxu0 0.0
    %163 = vmatprep.subr.mxu0 0.0
    %164 = vmatpush1.msra.mxu0 0.0
    %165 = vmatprep.subr.mxu0 0.0
    %166 = vmatpush1.msra.mxu0 0.0
    %167 = vmatprep.subr.mxu0 0.0
    %168 = vmatpush1.msra.mxu0 0.0
    %169 = vmatprep.subr.mxu0 0.0
    %170 = vmatpush1.msra.mxu0 0.0
    %171 = vmatprep.subr.mxu0 0.0
    %172 = vmatpush1.msra.mxu0 0.0
    %173 = vmatprep.subr.mxu0 0.0
    %174 = vmatpush1.msra.mxu0 0.0
    %175 = vmatprep.subr.mxu0 0.0
    %176 = vmatpush1.msra.mxu0 0.0
    %177 = vmatprep.subr.mxu0 %v149
    %178 = vmatpush1.msra.mxu0 %v146
    %179 = vmatprep.subr.mxu0 %v52
    %180 = vmatpush1.msra.mxu0 %v51
    %181 = vmatprep.subr.mxu0 %v50
    %182 = vmatpush1.msra.mxu0 %v49
    %183 = vmatprep.subr.mxu0 0.0
    %184 = vmatpush2.msra.mxu0 0.0
    %185 = vmatprep.subr.mxu0 0.0
    %186 = vmatpush2.msra.mxu0 0.0
    %187 = vmatprep.subr.mxu0 0.0
    %188 = vmatpush2.msra.mxu0 0.0
    %189 = vmatprep.subr.mxu0 0.0
    %190 = vmatpush2.msra.mxu0 0.0
    %191 = vmatprep.subr.mxu0 0.0
    %192 = vmatpush2.msra.mxu0 0.0
    %193 = vmatprep.subr.mxu0 0.0
    %194 = vmatpush2.msra.mxu0 0.0
    %195 = vmatprep.subr.mxu0 0.0
    %196 = vmatpush2.msra.mxu0 0.0
    %197 = vmatprep.subr.mxu0 0.0
    %198 = vmatpush2.msra.mxu0 0.0
    %199 = vmatprep.subr.mxu0 0.0
    %200 = vmatpush2.msra.mxu0 0.0
    %201 = vmatprep.subr.mxu0 0.0
    %202 = vmatpush2.msra.mxu0 0.0
    %203 = vmatprep.subr.mxu0 0.0
    %204 = vmatpush2.msra.mxu0 0.0
    %205 = vmatprep.subr.mxu0 0.0
    %206 = vmatpush2.msra.mxu0 0.0
    %207 = vmatprep.subr.mxu0 0.0
    %208 = vmatpush2.msra.mxu0 0.0
    %209 = vmatprep.subr.mxu0 0.0
    %210 = vmatpush2.msra.mxu0 0.0
    %211 = vmatprep.subr.mxu0 0.0
    %212 = vmatpush2.msra.mxu0 0.0
    %213 = vmatprep.subr.mxu0 0.0
    %214 = vmatpush2.msra.mxu0 0.0
    %215 = vmatprep.mubr.f32.mxu0 0.0
    %216 = vmatmul.mubr.f32.gmra.mxu0 %v142
    %v217 = vpop.f32.mrf.mxu0
    %v218 = vadd.f32 %v136, %v217
    %v219 = vpop.f32.mrf.mxu0
    %v220 = vadd.f32 %v138, %v219
    %221 = vdwg.mxu0
    %v222 = vld [vmem:[%s4] sm:$0x3]
    %v224 = vlaneseq
    %v225 = vshrl.u32 %v224, 7
    %v226 = vsub.s32 0, %v225
    %v227 = vrot.slane %v222, %v226
    %v228 = vlaneseq
    %v229 = vshrl.u32 %v228, 7
    %v230 = vsub.s32 1, %v229
    %v231 = vrot.slane %v222, %v230
    %v234 = vadd.f32 %v218, %v227
    %v235 = vadd.f32 %v220, %v231
    %v236 = vmax.f32 %v234, 0.0
    %v237 = vmax.f32 %v235, 0.0
    %v238 = vld [vmem:[#allocation3] sm:$0xff]
    %v239 = vld [vmem:[#allocation3 + $0x8] sm:$0xff]
    %v240 = vld [vmem:[#allocation3 + $0x10] sm:$0xff]
    %v241 = vld [vmem:[#allocation3 + $0x18] sm:$0xff]
    %v242 = vld [vmem:[#allocation3 + $0x20] sm:$0xff]
    %v243 = vld [vmem:[#allocation3 + $0x28] sm:$0xff]
    %v244 = vld [vmem:[#allocation3 + $0x30] sm:$0xff]
    %v245 = vld [vmem:[#allocation3 + $0x38] sm:$0xff]
    %v246 = vld [vmem:[#allocation3 + $0x40] sm:$0xff]
    %v247 = vld [vmem:[#allocation3 + $0x48] sm:$0xff]
    %v248 = vld [vmem:[#allocation3 + $0x50] sm:$0xff]
    %v249 = vld [vmem:[#allocation3 + $0x58] sm:$0xff]
    %v250 = vld [vmem:[#allocation3 + $0x60] sm:$0xff]
    %v251 = vld [vmem:[#allocation3 + $0x68] sm:$0xff]
    %v252 = vld [vmem:[#allocation3 + $0x70] sm:$0xff]
    %v253 = vld [vmem:[#allocation3 + $0x78] sm:$0xff]
    %v254 = vld [vmem:[#allocation3 + $0x80] sm:$0xff]
    %v255 = vld [vmem:[#allocation3 + $0x88] sm:$0xff]
    %v256 = vld [vmem:[#allocation3 + $0x90] sm:$0xff]
    %v257 = vld [vmem:[#allocation3 + $0x98] sm:$0xff]
    %v258 = vld [vmem:[#allocation3 + $0xa0] sm:$0xff]
    %v259 = vld [vmem:[#allocation3 + $0xa8] sm:$0xff]
    %v260 = vld [vmem:[#allocation3 + $0xb0] sm:$0xff]
    %v261 = vld [vmem:[#allocation3 + $0xb8] sm:$0xff]
    %v262 = vld [vmem:[#allocation3 + $0xc0] sm:$0xff]
    %v263 = vld [vmem:[#allocation3 + $0xc8] sm:$0xff]
    %v264 = vld [vmem:[#allocation3 + $0xd0] sm:$0xff]
    %v265 = vld [vmem:[#allocation3 + $0xd8] sm:$0xff]
    %v266 = vld [vmem:[#allocation3 + $0xe0] sm:$0xff]
    %v267 = vld [vmem:[#allocation3 + $0xe8] sm:$0xff]
    %v268 = vld [vmem:[#allocation3 + $0xf0] sm:$0xff]
    %v269 = vld [vmem:[#allocation3 + $0xf8] sm:$0xff]
    %v270 = vld [vmem:[#allocation3 + $0x100] sm:$0xff]
    %v271 = vld [vmem:[#allocation3 + $0x108] sm:$0xff]
    %v272 = vld [vmem:[#allocation3 + $0x110] sm:$0xff]
    %v273 = vld [vmem:[#allocation3 + $0x118] sm:$0xff]
    %v274 = vld [vmem:[#allocation3 + $0x120] sm:$0xff]
    %v275 = vld [vmem:[#allocation3 + $0x128] sm:$0xff]
    %v276 = vld [vmem:[#allocation3 + $0x130] sm:$0xff]
    %v277 = vld [vmem:[#allocation3 + $0x138] sm:$0xff]
    %v278 = vld [vmem:[#allocation3 + $0x140] sm:$0xff]
    %v279 = vld [vmem:[#allocation3 + $0x148] sm:$0xff]
    %v280 = vld [vmem:[#allocation3 + $0x150] sm:$0xff]
    %v281 = vld [vmem:[#allocation3 + $0x158] sm:$0xff]
    %v282 = vld [vmem:[#allocation3 + $0x160] sm:$0xff]
    %v283 = vld [vmem:[#allocation3 + $0x168] sm:$0xff]
    %v284 = vld [vmem:[#allocation3 + $0x170] sm:$0xff]
    %v285 = vld [vmem:[#allocation3 + $0x178] sm:$0xff]
    %v286 = vld [vmem:[#allocation3 + $0x180] sm:$0xff]
    %v287 = vld [vmem:[#allocation3 + $0x188] sm:$0xff]
    %v288 = vld [vmem:[#allocation3 + $0x190] sm:$0xff]
    %v289 = vld [vmem:[#allocation3 + $0x198] sm:$0xff]
    %v290 = vld [vmem:[#allocation3 + $0x1a0] sm:$0xff]
    %v291 = vld [vmem:[#allocation3 + $0x1a8] sm:$0xff]
    %v292 = vld [vmem:[#allocation3 + $0x1b0] sm:$0xff]
    %v293 = vld [vmem:[#allocation3 + $0x1b8] sm:$0xff]
    %v294 = vld [vmem:[#allocation3 + $0x1c0] sm:$0xff]
    %v295 = vld [vmem:[#allocation3 + $0x1c8] sm:$0xff]
    %v296 = vld [vmem:[#allocation3 + $0x1d0] sm:$0xff]
    %v297 = vld [vmem:[#allocation3 + $0x1d8] sm:$0xff]
    %v298 = vld [vmem:[#allocation3 + $0x1e0] sm:$0xff]
    %v299 = vld [vmem:[#allocation3 + $0x1e8] sm:$0xff]
    %v300 = vld [vmem:[#allocation3 + $0x1f0] sm:$0xff]
    %v301 = vld [vmem:[#allocation3 + $0x1f8] sm:$0xff]
    %v302 = vld [vmem:[%s6] sm:$0x3]
    %v304 = vlaneseq
    %v305 = vshrl.u32 %v304, 7
    %v306 = vsub.s32 0, %v305
    %v307 = vrot.slane %v302, %v306
    %v308 = vlaneseq
    %v309 = vshrl.u32 %v308, 7
    %v310 = vsub.s32 1, %v309
    %v311 = vrot.slane %v302, %v310
    %314 = vmatprep.subr.mxu0 %v269
    %315 = vmatpush1.msra.mxu0 %v268
    %316 = vmatprep.subr.mxu0 %v267
    %317 = vmatpush1.msra.mxu0 %v266
    %318 = vmatprep.subr.mxu0 %v265
    %319 = vmatpush1.msra.mxu0 %v264
    %320 = vmatprep.subr.mxu0 %v263
    %321 = vmatpush1.msra.mxu0 %v262
    %322 = vmatprep.subr.mxu0 %v261
    %323 = vmatpush1.msra.mxu0 %v260
    %324 = vmatprep.subr.mxu0 %v259
    %325 = vmatpush1.msra.mxu0 %v258
    %326 = vmatprep.subr.mxu0 %v257
    %327 = vmatpush1.msra.mxu0 %v256
    %328 = vmatprep.subr.mxu0 %v255
    %329 = vmatpush1.msra.mxu0 %v254
    %330 = vmatprep.subr.mxu0 %v253
    %331 = vmatpush1.msra.mxu0 %v252
    %332 = vmatprep.subr.mxu0 %v251
    %333 = vmatpush1.msra.mxu0 %v250
    %334 = vmatprep.subr.mxu0 %v249
    %335 = vmatpush1.msra.mxu0 %v248
    %336 = vmatprep.subr.mxu0 %v247
    %337 = vmatpush1.msra.mxu0 %v246
    %338 = vmatprep.subr.mxu0 %v245
    %339 = vmatpush1.msra.mxu0 %v244
    %340 = vmatprep.subr.mxu0 %v243
    %341 = vmatpush1.msra.mxu0 %v242
    %342 = vmatprep.subr.mxu0 %v241
    %343 = vmatpush1.msra.mxu0 %v240
    %344 = vmatprep.subr.mxu0 %v239
    %345 = vmatpush1.msra.mxu0 %v238
    %346 = vmatprep.subr.mxu0 %v301
    %347 = vmatpush2.msra.mxu0 %v300
    %348 = vmatprep.subr.mxu0 %v299
    %349 = vmatpush2.msra.mxu0 %v298
    %350 = vmatprep.subr.mxu0 %v297
    %351 = vmatpush2.msra.mxu0 %v296
    %352 = vmatprep.subr.mxu0 %v295
    %353 = vmatpush2.msra.mxu0 %v294
    %354 = vmatprep.subr.mxu0 %v293
    %355 = vmatpush2.msra.mxu0 %v292
    %356 = vmatprep.subr.mxu0 %v291
    %357 = vmatpush2.msra.mxu0 %v290
    %358 = vmatprep.subr.mxu0 %v289
    %359 = vmatpush2.msra.mxu0 %v288
    %360 = vmatprep.subr.mxu0 %v287
    %361 = vmatpush2.msra.mxu0 %v286
    %362 = vmatprep.subr.mxu0 %v285
    %363 = vmatpush2.msra.mxu0 %v284
    %364 = vmatprep.subr.mxu0 %v283
    %365 = vmatpush2.msra.mxu0 %v282
    %366 = vmatprep.subr.mxu0 %v281
    %367 = vmatpush2.msra.mxu0 %v280
    %368 = vmatprep.subr.mxu0 %v279
    %369 = vmatpush2.msra.mxu0 %v278
    %370 = vmatprep.subr.mxu0 %v277
    %371 = vmatpush2.msra.mxu0 %v276
    %372 = vmatprep.subr.mxu0 %v275
    %373 = vmatpush2.msra.mxu0 %v274
    %374 = vmatprep.subr.mxu0 %v273
    %375 = vmatpush2.msra.mxu0 %v272
    %376 = vmatprep.subr.mxu0 %v271
    %377 = vmatpush2.msra.mxu0 %v270
    %378 = vmatprep.mubr.f32.mxu0 %v237
    %379 = vmatmul.mubr.f32.gmra.mxu0 %v236
    %v380 = vpop.f32.mrf.mxu0
    %v381 = vadd.f32 %v307, %v380
    %v382 = vpop.f32.mrf.mxu0
    %v383 = vadd.f32 %v311, %v382
    %384 = vdwg.mxu0
    %v385 = vmax.f32 %v381, 0.0
    %v386 = vmax.f32 %v383, 0.0
    %v387 = vld [vmem:[%s7] sm:$0x3]
    %v389 = vlaneseq
    %v390 = vshrl.u32 %v389, 7
    %v391 = vsub.s32 0, %v390
    %v392 = vrot.slane %v387, %v391
    %v393 = vlaneseq
    %v394 = vshrl.u32 %v393, 7
    %v395 = vsub.s32 1, %v394
    %v396 = vrot.slane %v387, %v395
    %v399 = vmul.f32 %v385, %v392
    %v400 = vmul.f32 %v386, %v396
    %v401 = vadd.f32 %v399, %v400
    %402 = vadd.xlane.f32.xlu0 %v401
    %v403 = vpop.xlane.xlu0 %402
    %v404 = vld [vmem:[#allocation2] sm:$0x1]
    %v406 = vlaneseq
    %v407 = vshrl.u32 %v406, 7
    %v408 = vsub.s32 0, %v407
    %v409 = vrot.slane %v404, %v408
    %v411 = vadd.f32 %v403, %v409
    %vm412 = vcmask 7168
    %413 = vst.msk [vmem:[%s9] sm:$0xff] %vm412, %v411
    // Predicated region
    $region42: #{tpu_custom_call.1} parent=1 // pred_check
      _
    $region43: #{tpu_custom_call.1} parent=1 // pred_check_branch
      %415 = sbr.rel (0) target = $region45
    $region44: #{tpu_custom_call.1} parent=1 // pred_region
      _
    $region45: #{tpu_custom_call.1} parent=1 // pred_fallthru
      _
    // Predicated region
    $region46: #{tpu_custom_call.1} parent=1 // pred_check
      _
    $region47: #{tpu_custom_call.1} parent=1 // pred_check_branch
      %417 = sbr.rel (0) target = $region49
    $region48: #{tpu_custom_call.1} parent=1 // pred_region
      _
    $region49: #{tpu_custom_call.1} parent=1 // pred_fallthru
      _
    %418 = vsyncpa [#allocation4], 1

</llo_original>
